<compile_context>
chip_gen: v7x
topology: tpu7x:2x2x1
jax: 0.10.0
libtpu: 0.0.40
codegen_flags: <defaults>
</compile_context>

<pallas_src>
import functools

import jax
import jax.numpy as jnp
from jax.experimental import pallas as pl
from jax.experimental.pallas import tpu as pltpu

EPS = 1e-5


def _im2col_3x3(h4, bt, hp, wp, c):
    """(bt, hp, wp, c) bf16 -> (bt*hp*wp, 9*c) bf16: zero-padded 3x3 neighborhoods.

    Tap order is (kh, kw, c), matching weights reshaped OIHW -> (kh, kw, I, O) -> (9I, O).
    All shifts are value-level slice+concat (no padded VMEM scratch, no per-tap reloads),
    and everything stays in bf16 (cast happened once, before this call).
    """
    zrow = jnp.zeros((bt, 1, wp, c), h4.dtype)
    zcol = jnp.zeros((bt, hp, 1, c), h4.dtype)
    # Column (W) shifts: shifted[x] = h4[x + dx], zero outside the image.
    xm1 = jnp.concatenate([zcol, h4[:, :, :wp - 1, :]], axis=2)   # dx = -1
    xp1 = jnp.concatenate([h4[:, :, 1:, :], zcol], axis=2)        # dx = +1
    cols = (xm1, h4, xp1)                                         # dx = -1, 0, +1

    taps = []
    for dy in (-1, 0, 1):                                         # kh = 0, 1, 2
        for t in cols:                                            # kw = 0, 1, 2
            if dy == -1:                                          # row above
                t = jnp.concatenate([zrow, t[:, :hp - 1]], axis=1)
            elif dy == 1:                                         # row below
                t = jnp.concatenate([t[:, 1:], zrow], axis=1)
            taps.append(t)
    return jnp.concatenate(taps, axis=-1).reshape(bt * hp * wp, 9 * c)


def _conv_bn_relu(h4_bf16, w_ref, t_ref, bt, hp, wp, c):
    # One im2col matmul per conv: (M, 9c) @ (9c, cout), bf16 operands, f32 accumulate.
    a = _im2col_3x3(h4_bf16, bt, hp, wp, c)
    acc = jnp.dot(a, w_ref[...], preferred_element_type=jnp.float32)
    # BN scale is pre-folded into w_ref; only the per-channel shift + ReLU remain (f32).
    return jnp.maximum(acc + t_ref[...], 0.0)                     # (M, cout) f32


def _down_kernel(x_ref, w1_ref, t1_ref, w2_ref, t2_ref, o_ref,
                 *, bt, hp, wp, cin, cout):
    # x_ref: (bt*hp, 2, wp, 2*cin) bf16.  Axis 1 holds the two pooled H rows and the last
    # axis the (x-even | x-odd) column pair -> 2x2 max pool is one major-axis max plus
    # one lane-half max, entirely in registers (max in bf16 is exact w.r.t. the bf16
    # inputs, so pooling before/after the cast is equivalent).
    x = x_ref[...]
    m = jnp.max(x, axis=1)                                   # (bt*hp, wp, 2*cin)
    pooled = jnp.maximum(m[..., :cin], m[..., cin:])         # (bt*hp, wp, cin) bf16
    pooled = pooled.reshape(bt, hp, wp, cin)

    h1 = _conv_bn_relu(pooled, w1_ref, t1_ref, bt, hp, wp, cin)          # (M, cout) f32
    h1b = h1.astype(jnp.bfloat16).reshape(bt, hp, wp, cout)              # keep bf16
    h2 = _conv_bn_relu(h1b, w2_ref, t2_ref, bt, hp, wp, cout)
    o_ref[...] = h2                                          # (bt*hp*wp, cout) f32


def _vmem_estimate_bytes(bt, hp, wp, cin, cout):
    m = bt * hp * wp
    est = 0
    est += 2 * (bt * hp * 2 * wp * 2 * cin) * 2      # bf16 input block, double buffered
    est += 2 * m * 9 * cin * 2                       # im2col #1 (bf16) + tap headroom
    est += 2 * m * 9 * cout * 2                      # im2col #2 (bf16) + tap headroom
    est += 2 * m * cout * 4                          # two f32 accumulators live-ish
    est += m * cout * 2                              # bf16 h1
    est += 2 * m * cout * 4                          # f32 output block, double buffered
    est += (9 * cin * cout + 9 * cout * cout) * 2 + 2 * cout * 4   # weights / shifts
    return int(est * 1.5)                            # safety margin


def down_forward(x_nchw, params, *, batch_tile=None):
    n, cin, h, w = x_nchw.shape
    assert h % 2 == 0 and w % 2 == 0, "down_forward requires even H and W"
    hp, wp = h // 2, w // 2
    cout = params["conv1_w"].shape[0]

    # Fat grid steps: target ~512 matmul rows per step (amortizes MXU push/drain and the
    # ~0.35us/step overhead), but keep at least 2 grid steps when n >= 2 so the
    # "parallel" axis can actually be sharded across v7x's two TensorCores.
    if batch_tile is None:
        rows_target = 512
        batch_tile = max(1, min(n, (rows_target + hp * wp - 1) // (hp * wp)))
        if n >= 2:
            batch_tile = min(batch_tile, n // 2)
        while n % batch_tile:
            batch_tile -= 1
    bt = batch_tile

    # NCHW -> NHWC (channels-last for the matmuls), cast to bf16 once (halves the HBM
    # stream), then a FREE contiguous reshape that pairs up the 2x2 pooling window.
    x_nhwc = jnp.transpose(x_nchw, (0, 2, 3, 1)).astype(jnp.bfloat16)
    x_r = x_nhwc.reshape(n * hp, 2, wp, 2 * cin)

    def fold(wgt, b, gamma, beta, mean, var):
        scale = gamma / jnp.sqrt(var + EPS)
        shift = (b - mean) * scale + beta
        ci, co = wgt.shape[1], wgt.shape[0]
        # OIHW -> (kh, kw, I, O) -> (9*I, O), fold the BN scale in f32, THEN cast to bf16
        # (avoids double rounding).
        w_mat = jnp.transpose(wgt, (2, 3, 1, 0)).reshape(9 * ci, co)
        w_mat = w_mat * scale[None, :]
        return (w_mat.astype(jnp.bfloat16),
                shift[None, :].astype(jnp.float32))

    w1, t1 = fold(params["conv1_w"], params["conv1_b"], params["bn1_g"],
                  params["bn1_b"], params["bn1_m"], params["bn1_v"])
    w2, t2 = fold(params["conv2_w"], params["conv2_b"], params["bn2_g"],
                  params["bn2_b"], params["bn2_m"], params["bn2_v"])

    kernel = functools.partial(_down_kernel, bt=bt, hp=hp, wp=wp, cin=cin, cout=cout)

    vmem_limit = int(min(64 * 2**20,
                         max(32 * 2**20, _vmem_estimate_bytes(bt, hp, wp, cin, cout))))

    out_flat = pl.pallas_call(
        kernel,
        out_shape=jax.ShapeDtypeStruct((n * hp * wp, cout), jnp.float32),
        grid_spec=pltpu.PrefetchScalarGridSpec(
            num_scalar_prefetch=0,
            grid=(n // bt,),
            in_specs=[
                pl.BlockSpec((bt * hp, 2, wp, 2 * cin), lambda i: (i, 0, 0, 0)),
                pl.BlockSpec((9 * cin, cout), lambda i: (0, 0)),
                pl.BlockSpec((1, cout), lambda i: (0, 0)),
                pl.BlockSpec((9 * cout, cout), lambda i: (0, 0)),
                pl.BlockSpec((1, cout), lambda i: (0, 0)),
            ],
            out_specs=pl.BlockSpec((bt * hp * wp, cout), lambda i: (i, 0)),
        ),
        compiler_params=pltpu.CompilerParams(
            # Batch blocks are independent -> shard across v7x's 2 TensorCores.
            dimension_semantics=("parallel",),
            vmem_limit_bytes=vmem_limit),
    )(x_r, w1, t1, w2, t2)

    out_nhwc = out_flat.reshape(n, hp, wp, cout)
    return jnp.transpose(out_nhwc, (0, 3, 1, 2))   # back to NCHW (PyTorch contract)


def init_params(key, in_ch, out_ch):
    ks = jax.random.split(key, 4)

    def conv_init(k, cout, cin):
        fan_in = cin * 9
        bound = 1.0 / jnp.sqrt(fan_in)
        kw, kb = jax.random.split(k)
        wgt = jax.random.uniform(kw, (cout, cin, 3, 3), jnp.float32, -bound, bound)
        b = jax.random.uniform(kb, (cout,), jnp.float32, -bound, bound)
        return wgt, b

    def bn_init(k, c):
        k1, k2, k3, k4 = jax.random.split(k, 4)
        return (jax.random.uniform(k1, (c,), jnp.float32, 0.5, 1.5),   # gamma
                0.1 * jax.random.normal(k2, (c,), jnp.float32),        # beta
                0.1 * jax.random.normal(k3, (c,), jnp.float32),        # running mean
                jax.random.uniform(k4, (c,), jnp.float32, 0.5, 1.5))   # running var

    w1, b1 = conv_init(ks[0], out_ch, in_ch)
    w2, b2 = conv_init(ks[1], out_ch, out_ch)
    g1, be1, m1, v1 = bn_init(ks[2], out_ch)
    g2, be2, m2, v2 = bn_init(ks[3], out_ch)
    return dict(conv1_w=w1, conv1_b=b1, bn1_g=g1, bn1_b=be1, bn1_m=m1, bn1_v=v1,
                conv2_w=w2, conv2_b=b2, bn2_g=g2, bn2_b=be2, bn2_m=m2, bn2_v=v2)


def ref_forward(x, p):
    pooled = jax.lax.reduce_window(x, -jnp.inf, jax.lax.max,
                                   (1, 1, 2, 2), (1, 1, 2, 2), "VALID")

    def block(hin, wgt, b, g, beta, m, v):
        y = jax.lax.conv_general_dilated(
            hin, wgt, window_strides=(1, 1), padding=((1, 1), (1, 1)),
            dimension_numbers=("NCHW", "OIHW", "NCHW"))
        y = y + b[None, :, None, None]
        y = (y - m[None, :, None, None]) * (g / jnp.sqrt(v + EPS))[None, :, None, None] \
            + beta[None, :, None, None]
        return jnp.maximum(y, 0.0)

    h = block(pooled, p["conv1_w"], p["conv1_b"], p["bn1_g"], p["bn1_b"], p["bn1_m"], p["bn1_v"])
    h = block(h, p["conv2_w"], p["conv2_b"], p["bn2_g"], p["bn2_b"], p["bn2_m"], p["bn2_v"])
    return h


if __name__ == "__main__":
    key = jax.random.PRNGKey(0)
    kx, kp = jax.random.split(key)
    in_ch, out_ch = 4, 8
    x = jax.random.normal(kx, (2, in_ch, 16, 16), jnp.float32)
    params = init_params(kp, in_ch, out_ch)

    out = down_forward(x, params)
    out = jax.block_until_ready(out)

    ref = ref_forward(x, params)
    assert out.shape == (2, out_ch, 8, 8), out.shape
    err = jnp.max(jnp.abs(out - ref))
    # bf16 inputs / bf16 MXU operands (f32 accumulation) vs. an all-f32 reference
    # -> relaxed tolerance (inference precision contract).
    assert jnp.allclose(out, ref, atol=5e-2, rtol=5e-2), f"max err {err}"
    print("KERNEL_OK")
</pallas_src>

<mosaic_0001>
module attributes {stable_mosaic.version = 11 : i64} {
  func.func @_down_kernel(%arg0: i32, %arg1: memref<8x2x8x8xbf16, #tpu.memory_space<vmem>>, %arg2: memref<36x8xbf16, #tpu.memory_space<vmem>>, %arg3: memref<1x8xf32, #tpu.memory_space<vmem>>, %arg4: memref<72x8xbf16, #tpu.memory_space<vmem>>, %arg5: memref<1x8xf32, #tpu.memory_space<vmem>>, %arg6: memref<64x8xf32, #tpu.memory_space<vmem>>) attributes {dimension_semantics = [#tpu.dimension_semantics<parallel>], iteration_bounds = array<i64: 2>, scalar_prefetch = 0 : i64, scratch_operands = 0 : i64, tpu.core_type = #tpu.core_type<tc>, window_params = [{transform_indices = @transform_0, window_bounds = array<i64: 8, 2, 8, 8>}, {pipeline_mode = #tpu.pipeline_mode<synchronous>, transform_indices = @transform_1, window_bounds = array<i64: 36, 8>}, {pipeline_mode = #tpu.pipeline_mode<synchronous>, transform_indices = @transform_2, window_bounds = array<i64: 1, 8>}, {pipeline_mode = #tpu.pipeline_mode<synchronous>, transform_indices = @transform_3, window_bounds = array<i64: 72, 8>}, {pipeline_mode = #tpu.pipeline_mode<synchronous>, transform_indices = @transform_4, window_bounds = array<i64: 1, 8>}, {transform_indices = @transform_5, window_bounds = array<i64: 64, 8>}]} {
    %c0 = arith.constant 0 : index
    %c0_0 = arith.constant 0 : index
    %c0_1 = arith.constant 0 : index
    %c0_2 = arith.constant 0 : index
    %0 = vector.load %arg1[%c0, %c0_0, %c0_1, %c0_2] : memref<8x2x8x8xbf16, #tpu.memory_space<vmem>>, vector<8x2x8x8xbf16>
    %cst = arith.constant dense<0xFF80> : vector<8x8x8xbf16>
    %1 = vector.multi_reduction <maximumf>, %0, %cst [1] : vector<8x2x8x8xbf16> to vector<8x8x8xbf16>
    %2 = vector.extract_strided_slice %1 {offsets = [0, 0, 0], sizes = [8, 8, 4], strides = [1, 1, 1]} : vector<8x8x8xbf16> to vector<8x8x4xbf16>
    %3 = vector.extract_strided_slice %1 {offsets = [0, 0, 4], sizes = [8, 8, 4], strides = [1, 1, 1]} : vector<8x8x8xbf16> to vector<8x8x4xbf16>
    %4 = arith.maximumf %2, %3 : vector<8x8x4xbf16>
    %5 = vector.shape_cast %4 : vector<8x8x4xbf16> to vector<1x8x8x4xbf16>
    %cst_3 = arith.constant 0.000000e+00 : bf16
    %6 = vector.broadcast %cst_3 : bf16 to vector<1x1x8x4xbf16>
    %cst_4 = arith.constant 0.000000e+00 : bf16
    %7 = vector.broadcast %cst_4 : bf16 to vector<1x8x1x4xbf16>
    %8 = vector.extract_strided_slice %5 {offsets = [0, 0, 0, 0], sizes = [1, 8, 7, 4], strides = [1, 1, 1, 1]} : vector<1x8x8x4xbf16> to vector<1x8x7x4xbf16>
    %9 = tpu.concatenate %7, %8 in 2 : vector<1x8x1x4xbf16>, vector<1x8x7x4xbf16> -> vector<1x8x8x4xbf16>
    %10 = vector.extract_strided_slice %5 {offsets = [0, 0, 1, 0], sizes = [1, 8, 7, 4], strides = [1, 1, 1, 1]} : vector<1x8x8x4xbf16> to vector<1x8x7x4xbf16>
    %11 = tpu.concatenate %10, %7 in 2 : vector<1x8x7x4xbf16>, vector<1x8x1x4xbf16> -> vector<1x8x8x4xbf16>
    %12 = vector.extract_strided_slice %9 {offsets = [0, 0, 0, 0], sizes = [1, 7, 8, 4], strides = [1, 1, 1, 1]} : vector<1x8x8x4xbf16> to vector<1x7x8x4xbf16>
    %13 = tpu.concatenate %6, %12 in 1 : vector<1x1x8x4xbf16>, vector<1x7x8x4xbf16> -> vector<1x8x8x4xbf16>
    %14 = vector.extract_strided_slice %5 {offsets = [0, 0, 0, 0], sizes = [1, 7, 8, 4], strides = [1, 1, 1, 1]} : vector<1x8x8x4xbf16> to vector<1x7x8x4xbf16>
    %15 = tpu.concatenate %6, %14 in 1 : vector<1x1x8x4xbf16>, vector<1x7x8x4xbf16> -> vector<1x8x8x4xbf16>
    %16 = vector.extract_strided_slice %11 {offsets = [0, 0, 0, 0], sizes = [1, 7, 8, 4], strides = [1, 1, 1, 1]} : vector<1x8x8x4xbf16> to vector<1x7x8x4xbf16>
    %17 = tpu.concatenate %6, %16 in 1 : vector<1x1x8x4xbf16>, vector<1x7x8x4xbf16> -> vector<1x8x8x4xbf16>
    %18 = vector.extract_strided_slice %9 {offsets = [0, 1, 0, 0], sizes = [1, 7, 8, 4], strides = [1, 1, 1, 1]} : vector<1x8x8x4xbf16> to vector<1x7x8x4xbf16>
    %19 = tpu.concatenate %18, %6 in 1 : vector<1x7x8x4xbf16>, vector<1x1x8x4xbf16> -> vector<1x8x8x4xbf16>
    %20 = vector.extract_strided_slice %5 {offsets = [0, 1, 0, 0], sizes = [1, 7, 8, 4], strides = [1, 1, 1, 1]} : vector<1x8x8x4xbf16> to vector<1x7x8x4xbf16>
    %21 = tpu.concatenate %20, %6 in 1 : vector<1x7x8x4xbf16>, vector<1x1x8x4xbf16> -> vector<1x8x8x4xbf16>
    %22 = vector.extract_strided_slice %11 {offsets = [0, 1, 0, 0], sizes = [1, 7, 8, 4], strides = [1, 1, 1, 1]} : vector<1x8x8x4xbf16> to vector<1x7x8x4xbf16>
    %23 = tpu.concatenate %22, %6 in 1 : vector<1x7x8x4xbf16>, vector<1x1x8x4xbf16> -> vector<1x8x8x4xbf16>
    %24 = tpu.concatenate %13, %15, %17, %9, %5, %11, %19, %21, %23 in 3 : vector<1x8x8x4xbf16>, vector<1x8x8x4xbf16>, vector<1x8x8x4xbf16>, vector<1x8x8x4xbf16>, vector<1x8x8x4xbf16>, vector<1x8x8x4xbf16>, vector<1x8x8x4xbf16>, vector<1x8x8x4xbf16>, vector<1x8x8x4xbf16> -> vector<1x8x8x36xbf16>
    %25 = vector.shape_cast %24 : vector<1x8x8x36xbf16> to vector<64x36xbf16>
    %c0_5 = arith.constant 0 : index
    %c0_6 = arith.constant 0 : index
    %26 = vector.load %arg2[%c0_5, %c0_6] : memref<36x8xbf16, #tpu.memory_space<vmem>>, vector<36x8xbf16>
    %cst_7 = arith.constant dense<0.000000e+00> : vector<64x8xf32>
    %27 = tpu.matmul %25, %26, %cst_7 {dimension_numbers = #tpu.dot_dimension_numbers<[1], [0], [0], [1], [0, 0, 1, 1], [], []>} : vector<64x36xbf16>, vector<36x8xbf16>, vector<64x8xf32> -> vector<64x8xf32>
    %c0_8 = arith.constant 0 : index
    %c0_9 = arith.constant 0 : index
    %28 = vector.load %arg3[%c0_8, %c0_9] : memref<1x8xf32, #tpu.memory_space<vmem>>, vector<1x8xf32>
    %29 = vector.broadcast %28 : vector<1x8xf32> to vector<64x8xf32>
    %30 = arith.addf %27, %29 : vector<64x8xf32>
    %cst_10 = arith.constant 0.000000e+00 : f32
    %31 = vector.broadcast %cst_10 : f32 to vector<64x8xf32>
    %32 = arith.maximumf %30, %31 : vector<64x8xf32>
    %33 = arith.truncf %32 : vector<64x8xf32> to vector<64x8xbf16>
    %34 = vector.shape_cast %33 : vector<64x8xbf16> to vector<1x8x8x8xbf16>
    %cst_11 = arith.constant 0.000000e+00 : bf16
    %35 = vector.broadcast %cst_11 : bf16 to vector<1x1x8x8xbf16>
    %cst_12 = arith.constant 0.000000e+00 : bf16
    %36 = vector.broadcast %cst_12 : bf16 to vector<1x8x1x8xbf16>
    %37 = vector.extract_strided_slice %34 {offsets = [0, 0, 0, 0], sizes = [1, 8, 7, 8], strides = [1, 1, 1, 1]} : vector<1x8x8x8xbf16> to vector<1x8x7x8xbf16>
    %38 = tpu.concatenate %36, %37 in 2 : vector<1x8x1x8xbf16>, vector<1x8x7x8xbf16> -> vector<1x8x8x8xbf16>
    %39 = vector.extract_strided_slice %34 {offsets = [0, 0, 1, 0], sizes = [1, 8, 7, 8], strides = [1, 1, 1, 1]} : vector<1x8x8x8xbf16> to vector<1x8x7x8xbf16>
    %40 = tpu.concatenate %39, %36 in 2 : vector<1x8x7x8xbf16>, vector<1x8x1x8xbf16> -> vector<1x8x8x8xbf16>
    %41 = vector.extract_strided_slice %38 {offsets = [0, 0, 0, 0], sizes = [1, 7, 8, 8], strides = [1, 1, 1, 1]} : vector<1x8x8x8xbf16> to vector<1x7x8x8xbf16>
    %42 = tpu.concatenate %35, %41 in 1 : vector<1x1x8x8xbf16>, vector<1x7x8x8xbf16> -> vector<1x8x8x8xbf16>
    %43 = vector.extract_strided_slice %34 {offsets = [0, 0, 0, 0], sizes = [1, 7, 8, 8], strides = [1, 1, 1, 1]} : vector<1x8x8x8xbf16> to vector<1x7x8x8xbf16>
    %44 = tpu.concatenate %35, %43 in 1 : vector<1x1x8x8xbf16>, vector<1x7x8x8xbf16> -> vector<1x8x8x8xbf16>
    %45 = vector.extract_strided_slice %40 {offsets = [0, 0, 0, 0], sizes = [1, 7, 8, 8], strides = [1, 1, 1, 1]} : vector<1x8x8x8xbf16> to vector<1x7x8x8xbf16>
    %46 = tpu.concatenate %35, %45 in 1 : vector<1x1x8x8xbf16>, vector<1x7x8x8xbf16> -> vector<1x8x8x8xbf16>
    %47 = vector.extract_strided_slice %38 {offsets = [0, 1, 0, 0], sizes = [1, 7, 8, 8], strides = [1, 1, 1, 1]} : vector<1x8x8x8xbf16> to vector<1x7x8x8xbf16>
    %48 = tpu.concatenate %47, %35 in 1 : vector<1x7x8x8xbf16>, vector<1x1x8x8xbf16> -> vector<1x8x8x8xbf16>
    %49 = vector.extract_strided_slice %34 {offsets = [0, 1, 0, 0], sizes = [1, 7, 8, 8], strides = [1, 1, 1, 1]} : vector<1x8x8x8xbf16> to vector<1x7x8x8xbf16>
    %50 = tpu.concatenate %49, %35 in 1 : vector<1x7x8x8xbf16>, vector<1x1x8x8xbf16> -> vector<1x8x8x8xbf16>
    %51 = vector.extract_strided_slice %40 {offsets = [0, 1, 0, 0], sizes = [1, 7, 8, 8], strides = [1, 1, 1, 1]} : vector<1x8x8x8xbf16> to vector<1x7x8x8xbf16>
    %52 = tpu.concatenate %51, %35 in 1 : vector<1x7x8x8xbf16>, vector<1x1x8x8xbf16> -> vector<1x8x8x8xbf16>
    %53 = tpu.concatenate %42, %44, %46, %38, %34, %40, %48, %50, %52 in 3 : vector<1x8x8x8xbf16>, vector<1x8x8x8xbf16>, vector<1x8x8x8xbf16>, vector<1x8x8x8xbf16>, vector<1x8x8x8xbf16>, vector<1x8x8x8xbf16>, vector<1x8x8x8xbf16>, vector<1x8x8x8xbf16>, vector<1x8x8x8xbf16> -> vector<1x8x8x72xbf16>
    %54 = vector.shape_cast %53 : vector<1x8x8x72xbf16> to vector<64x72xbf16>
    %c0_13 = arith.constant 0 : index
    %c0_14 = arith.constant 0 : index
    %55 = vector.load %arg4[%c0_13, %c0_14] : memref<72x8xbf16, #tpu.memory_space<vmem>>, vector<72x8xbf16>
    %cst_15 = arith.constant dense<0.000000e+00> : vector<64x8xf32>
    %56 = tpu.matmul %54, %55, %cst_15 {dimension_numbers = #tpu.dot_dimension_numbers<[1], [0], [0], [1], [0, 0, 1, 1], [], []>} : vector<64x72xbf16>, vector<72x8xbf16>, vector<64x8xf32> -> vector<64x8xf32>
    %c0_16 = arith.constant 0 : index
    %c0_17 = arith.constant 0 : index
    %57 = vector.load %arg5[%c0_16, %c0_17] : memref<1x8xf32, #tpu.memory_space<vmem>>, vector<1x8xf32>
    %58 = vector.broadcast %57 : vector<1x8xf32> to vector<64x8xf32>
    %59 = arith.addf %56, %58 : vector<64x8xf32>
    %cst_18 = arith.constant 0.000000e+00 : f32
    %60 = vector.broadcast %cst_18 : f32 to vector<64x8xf32>
    %61 = arith.maximumf %59, %60 : vector<64x8xf32>
    %c0_19 = arith.constant 0 : index
    %c0_20 = arith.constant 0 : index
    %62 = vector.load %arg6[%c0_19, %c0_20] : memref<64x8xf32, #tpu.memory_space<vmem>>, vector<64x8xf32>
    tpu.vector_store %arg6[%c0_19, %c0_20], %61 {strides = array<i32>} : memref<64x8xf32, #tpu.memory_space<vmem>>, vector<64x8xf32>,
    return
  }
  func.func @transform_0(%arg0: i32) -> (i32, i32, i32, i32) {
    %c0_i32 = arith.constant 0 : i32
    %c0_i32_0 = arith.constant 0 : i32
    %c0_i32_1 = arith.constant 0 : i32
    %c0_i32_2 = arith.constant 0 : i32
    return %arg0, %c0_i32, %c0_i32_0, %c0_i32_1 : i32, i32, i32, i32
  }
  func.func @transform_1(%arg0: i32) -> (i32, i32) {
    %c0_i32 = arith.constant 0 : i32
    %c0_i32_0 = arith.constant 0 : i32
    %c0_i32_1 = arith.constant 0 : i32
    return %c0_i32, %c0_i32_0 : i32, i32
  }
  func.func @transform_2(%arg0: i32) -> (i32, i32) {
    %c0_i32 = arith.constant 0 : i32
    %c0_i32_0 = arith.constant 0 : i32
    %c0_i32_1 = arith.constant 0 : i32
    return %c0_i32, %c0_i32_0 : i32, i32
  }
  func.func @transform_3(%arg0: i32) -> (i32, i32) {
    %c0_i32 = arith.constant 0 : i32
    %c0_i32_0 = arith.constant 0 : i32
    %c0_i32_1 = arith.constant 0 : i32
    return %c0_i32, %c0_i32_0 : i32, i32
  }
  func.func @transform_4(%arg0: i32) -> (i32, i32) {
    %c0_i32 = arith.constant 0 : i32
    %c0_i32_0 = arith.constant 0 : i32
    %c0_i32_1 = arith.constant 0 : i32
    return %c0_i32, %c0_i32_0 : i32, i32
  }
  func.func @transform_5(%arg0: i32) -> (i32, i32) {
    %c0_i32 = arith.constant 0 : i32
    %c0_i32_0 = arith.constant 0 : i32
    return %arg0, %c0_i32 : i32, i32
  }
}

</mosaic_0001>

<llo_original>
// kernel: tpu_custom_call.1
$region0: #{tpu_custom_call.1}
  #allocation0 [shape = 'u32[]', space=smem, size = 0x4, offset = 0x4, fixed_abs, tag = 'smem constant byte address 0x4 - core index']
  #allocation1 [shape = 'u32[144,128]{1,0:T(1,128)}', space=vmem, size = 0x12000, scoped, tag = 'internal scratch']
  %s0 = inlined_call_operand.vmem [shape: bf16[16,2,8,8], index: 0, kind: input, shape index: {}]
  %s1 = inlined_call_operand.vmem [shape: bf16[36,8], index: 1, kind: input, shape index: {}]
  %s2 = inlined_call_operand.vmem [shape: f32[1,8], index: 2, kind: input, shape index: {}]
  %s3 = inlined_call_operand.vmem [shape: bf16[72,8], index: 3, kind: input, shape index: {}]
  %s4 = inlined_call_operand.vmem [shape: f32[1,8], index: 4, kind: input, shape index: {}]
  %s5 = inlined_call_operand.vmem [shape: f32[128,8], index: 5, kind: output, shape index: {}]
  %s6 = sld [smem:[#allocation0]]
  $region53: #{tpu_custom_call.1} parent=0
    _
  %s8 = ssub.s32 1, %s6
  %s9 = scalar_select 0, %s8, %s6
  loop: start=0, step=1, limit=4
  $region2: #{tpu_custom_call.1} parent=0 // loop_pre_header
    _
  $region3: #{tpu_custom_call.1} parent=0 // loop_header
    %s11 = sphi 0, %s15
    %p12 = scmp.ge.s32.totalorder %s11, 4
    %s21 = sphi 0, %s23
    %s24 = sphi 0, %s21
    %s25 = sphi 0, %s24
    %s41 = sphi 0, %s25
    %s45 = sphi 0, %s45
    %s47 = sphi 0, %s45
    %s48 = sphi 0, %s47
    %s62 = sphi 0, %s48
    %s66 = sphi 0, %s66
    %s68 = sphi 0, %s66
    %s69 = sphi 0, %s68
    %s83 = sphi 0, %s69
    %s87 = sphi 0, %s87
    %s89 = sphi 0, %s87
    %s90 = sphi 0, %s89
    %s104 = sphi 0, %s90
    %s108 = sphi 0, %s108
    %s110 = sphi 0, %s108
    %s111 = sphi 0, %s110
    %s125 = sphi 0, %s111
    %s131 = sphi 0, %s133
    %s134 = sphi 0, %s131
    %s135 = sphi 0, %s134
    %s151 = sphi 0, %s135
  $region4: #{tpu_custom_call.1} parent=0 // loop_header_branch
    %14 = sbr.rel (%p12) target = $region8
  $region5: #{tpu_custom_call.1} parent=0 // loop_body
    %s16 = ssub.s32 %s11, 1
    %s17 = ssub.s32 %s11, 2
    %s18 = sadd.s32 %s11, 1
    %s19 = ssub.s32 %s11, %s18
    %p20 = scmp.eq.s32.totalorder %s19, 0
    %s22 = sadd.s32 %s21, 1
    %s23 = scalar_select %p20, %s21, %s22
    %p26 = pneg %p20
    %p27 = scmp.eq.s32.totalorder %s11, 1
    %p28 = por %p26, %p27
    %p29 = scmp.ne.s32.totalorder %s21, %s24
    %p30 = scmp.eq.s32.totalorder %s11, 0
    %p31 = por %p29, %p30
    %p32 = scmp.ne.s32.totalorder %s21, %s24
    %p33 = scmp.eq.s32.totalorder %s16, 1
    %p34 = por %p32, %p33
    %p35 = scmp.ne.s32.totalorder %s24, %s25
    %p36 = scmp.eq.s32.totalorder %s16, 0
    %p37 = por %p35, %p36
    %p38 = scmp.ne.s32.totalorder %s24, %s25
    %p39 = scmp.eq.s32.totalorder %s17, 1
    %p40 = por %p38, %p39
    %p42 = scmp.ne.s32.totalorder %s25, %s41
    %p43 = scmp.eq.s32.totalorder %s17, 0
    %p44 = por %p42, %p43
    %s46 = sadd.s32 %s45, 1
    %p49 = scmp.eq.s32.totalorder %s11, 1
    %p50 = scmp.ne.s32.totalorder %s45, %s47
    %p51 = scmp.eq.s32.totalorder %s11, 0
    %p52 = por %p50, %p51
    %p53 = scmp.ne.s32.totalorder %s45, %s47
    %p54 = scmp.eq.s32.totalorder %s16, 1
    %p55 = por %p53, %p54
    %p56 = scmp.ne.s32.totalorder %s47, %s48
    %p57 = scmp.eq.s32.totalorder %s16, 0
    %p58 = por %p56, %p57
    %p59 = scmp.ne.s32.totalorder %s47, %s48
    %p60 = scmp.eq.s32.totalorder %s17, 1
    %p61 = por %p59, %p60
    %p63 = scmp.ne.s32.totalorder %s48, %s62
    %p64 = scmp.eq.s32.totalorder %s17, 0
    %p65 = por %p63, %p64
    %s67 = sadd.s32 %s66, 1
    %p70 = scmp.eq.s32.totalorder %s11, 1
    %p71 = scmp.ne.s32.totalorder %s66, %s68
    %p72 = scmp.eq.s32.totalorder %s11, 0
    %p73 = por %p71, %p72
    %p74 = scmp.ne.s32.totalorder %s66, %s68
    %p75 = scmp.eq.s32.totalorder %s16, 1
    %p76 = por %p74, %p75
    %p77 = scmp.ne.s32.totalorder %s68, %s69
    %p78 = scmp.eq.s32.totalorder %s16, 0
    %p79 = por %p77, %p78
    %p80 = scmp.ne.s32.totalorder %s68, %s69
    %p81 = scmp.eq.s32.totalorder %s17, 1
    %p82 = por %p80, %p81
    %p84 = scmp.ne.s32.totalorder %s69, %s83
    %p85 = scmp.eq.s32.totalorder %s17, 0
    %p86 = por %p84, %p85
    %s88 = sadd.s32 %s87, 1
    %p91 = scmp.eq.s32.totalorder %s11, 1
    %p92 = scmp.ne.s32.totalorder %s87, %s89
    %p93 = scmp.eq.s32.totalorder %s11, 0
    %p94 = por %p92, %p93
    %p95 = scmp.ne.s32.totalorder %s87, %s89
    %p96 = scmp.eq.s32.totalorder %s16, 1
    %p97 = por %p95, %p96
    %p98 = scmp.ne.s32.totalorder %s89, %s90
    %p99 = scmp.eq.s32.totalorder %s16, 0
    %p100 = por %p98, %p99
    %p101 = scmp.ne.s32.totalorder %s89, %s90
    %p102 = scmp.eq.s32.totalorder %s17, 1
    %p103 = por %p101, %p102
    %p105 = scmp.ne.s32.totalorder %s90, %s104
    %p106 = scmp.eq.s32.totalorder %s17, 0
    %p107 = por %p105, %p106
    %s109 = sadd.s32 %s108, 1
    %p112 = scmp.eq.s32.totalorder %s11, 1
    %p113 = scmp.ne.s32.totalorder %s108, %s110
    %p114 = scmp.eq.s32.totalorder %s11, 0
    %p115 = por %p113, %p114
    %p116 = scmp.ne.s32.totalorder %s108, %s110
    %p117 = scmp.eq.s32.totalorder %s16, 1
    %p118 = por %p116, %p117
    %p119 = scmp.ne.s32.totalorder %s110, %s111
    %p120 = scmp.eq.s32.totalorder %s16, 0
    %p121 = por %p119, %p120
    %p122 = scmp.ne.s32.totalorder %s110, %s111
    %p123 = scmp.eq.s32.totalorder %s17, 1
    %p124 = por %p122, %p123
    %p126 = scmp.ne.s32.totalorder %s111, %s125
    %p127 = scmp.eq.s32.totalorder %s17, 0
    %p128 = por %p126, %p127
    %s129 = ssub.s32 %s11, %s18
    %p130 = scmp.eq.s32.totalorder %s129, 0
    %s132 = sadd.s32 %s131, 1
    %s133 = scalar_select %p130, %s131, %s132
    %p136 = pneg %p130
    %p137 = scmp.eq.s32.totalorder %s11, 1
    %p138 = por %p136, %p137
    %p139 = scmp.ne.s32.totalorder %s131, %s134
    %p140 = scmp.eq.s32.totalorder %s11, 0
    %p141 = por %p139, %p140
    %p142 = scmp.ne.s32.totalorder %s131, %s134
    %p143 = scmp.eq.s32.totalorder %s16, 1
    %p144 = por %p142, %p143
    %p145 = scmp.ne.s32.totalorder %s134, %s135
    %p146 = scmp.eq.s32.totalorder %s16, 0
    %p147 = por %p145, %p146
    %p148 = scmp.ne.s32.totalorder %s134, %s135
    %p149 = scmp.eq.s32.totalorder %s17, 1
    %p150 = por %p148, %p149
    %p152 = scmp.ne.s32.totalorder %s135, %s151
    %p153 = scmp.eq.s32.totalorder %s17, 0
    %p154 = por %p152, %p153
    %p155 = scmp.le.s32.totalorder 1, %s11
    %p156 = scmp.lt.s32.totalorder %s11, 3
    %p157 = pnand %p155, %p156
    %p158 = pneg %p157
    // Predicated region
    $region9: #{tpu_custom_call.1} parent=5 // pred_check
      _
    $region10: #{tpu_custom_call.1} parent=5 // pred_check_branch
      %160 = sbr.rel (%p157) target = $region12
    $region11: #{tpu_custom_call.1} parent=5 // pred_region
      %s161 = ssub.s32 %s11, 1
      // Predicated region
      $region13: #{tpu_custom_call.1} parent=11 // pred_check
        %p162 = pneg %p58
      $region14: #{tpu_custom_call.1} parent=11 // pred_check_branch
        %164 = sbr.rel (%p162) target = $region16
      $region15: #{tpu_custom_call.1} parent=11 // pred_region
        _
      $region16: #{tpu_custom_call.1} parent=11 // pred_fallthru
        _
      // Predicated region
      $region17: #{tpu_custom_call.1} parent=11 // pred_check
        %p165 = pneg %p79
      $region18: #{tpu_custom_call.1} parent=11 // pred_check_branch
        %167 = sbr.rel (%p165) target = $region20
      $region19: #{tpu_custom_call.1} parent=11 // pred_region
        _
      $region20: #{tpu_custom_call.1} parent=11 // pred_fallthru
        _
      // Predicated region
      $region21: #{tpu_custom_call.1} parent=11 // pred_check
        %p168 = pneg %p100
      $region22: #{tpu_custom_call.1} parent=11 // pred_check_branch
        %170 = sbr.rel (%p168) target = $region24
      $region23: #{tpu_custom_call.1} parent=11 // pred_region
        _
      $region24: #{tpu_custom_call.1} parent=11 // pred_fallthru
        _
      // Predicated region
      $region25: #{tpu_custom_call.1} parent=11 // pred_check
        %p171 = pneg %p121
      $region26: #{tpu_custom_call.1} parent=11 // pred_check_branch
        %173 = sbr.rel (%p171) target = $region28
      $region27: #{tpu_custom_call.1} parent=11 // pred_region
        _
      $region28: #{tpu_custom_call.1} parent=11 // pred_fallthru
        _
    $region12: #{tpu_custom_call.1} parent=5 // pred_fallthru
      _
    %p174 = scmp.lt.s32.totalorder %s11, 2
    // Predicated region
    $region29: #{tpu_custom_call.1} parent=5 // pred_check
      %p175 = pneg %p174
    $region30: #{tpu_custom_call.1} parent=5 // pred_check_branch
      %177 = sbr.rel (%p175) target = $region32
    $region31: #{tpu_custom_call.1} parent=5 // pred_region
      // Predicated region
      $region33: #{tpu_custom_call.1} parent=31 // pred_check
        %p178 = pneg %p31
      $region34: #{tpu_custom_call.1} parent=31 // pred_check_branch
        %180 = sbr.rel (%p178) target = $region36
      $region35: #{tpu_custom_call.1} parent=31 // pred_region
        %s181 = smul.u32 8, %s11
        %p182 = scmp.lt.s32.totalorder %s181, 15
        %s183 = scalar_select %p182, %s181, 15
        %s184 = smul.addr %s183, 2
        %s185 = smul.addr %s184, 4
        %s186 = scalar_lea.vmem %s0, %s185
        %s187 = smul.u32 8, %s11
      $region36: #{tpu_custom_call.1} parent=31 // pred_fallthru
        _
    $region32: #{tpu_custom_call.1} parent=5 // pred_fallthru
      _
    %p188 = scmp.le.s32.totalorder 1, %s11
    %p189 = scmp.lt.s32.totalorder %s11, 3
    %p190 = pnand %p188, %p189
    %p191 = pneg %p190
    // Predicated region
    $region37: #{tpu_custom_call.1} parent=5 // pred_check
      _
    $region38: #{tpu_custom_call.1} parent=5 // pred_check_branch
      %193 = sbr.rel (%p190) target = $region40
    $region39: #{tpu_custom_call.1} parent=5 // pred_region
      %s194 = ssub.s32 %s11, 1
      %s195 = smul.u32 8, %s16
      %p196 = scmp.lt.s32.totalorder %s195, 15
      %s197 = scalar_select %p196, %s195, 15
      %s198 = smul.addr %s197, 2
      %s199 = smul.addr %s198, 4
      %s200 = scalar_lea.vmem %s0, %s199
      %p201 = pneg %p37
      %p202 = pneg %p34
      %p203 = pneg %p58
      %p204 = pneg %p55
      %p205 = pneg %p79
      %p206 = pneg %p76
      %p207 = pneg %p100
      %p208 = pneg %p97
      %p209 = pneg %p121
      %p210 = pneg %p118
      %p211 = pneg %p147
      %p212 = pneg %p144
      %s213 = smul.u32 8, %s16
      %p214 = scmp.lt.s32.totalorder %s213, 15
      %s215 = scalar_select %p214, %s213, 15
      %s216 = smul.addr %s215, 8
      %s217 = scalar_lea.vmem %s5, %s216
      %s218 = smul.u32 8, %s16
      %p219 = scmp.lt.s32.totalorder %s218, 15
      %s220 = scalar_select %p219, %s218, 15
      %s221 = smul.addr %s220, 2
      %s222 = smul.addr %s221, 4
      %s223 = scalar_lea.vmem %s0, %s222
      %s224 = smul.u32 8, %s16
      %s225 = smul.u32 8, %s16
      %p226 = scmp.lt.s32.totalorder %s225, 15
      %s227 = scalar_select %p226, %s225, 15
      %s228 = smul.addr %s227, 8
      %s229 = scalar_lea.vmem %s5, %s228
      %s230 = smul.u32 8, %s16
      %v233 = vld [vmem:[%s223] sm:$0xf]
      %v234 = vld [vmem:[%s223 + $0x4] sm:$0xf]
      %v235 = vld [vmem:[%s223 + $0x8] sm:$0xf]
      %v236 = vld [vmem:[%s223 + $0xc] sm:$0xf]
      %v237 = vld [vmem:[%s223 + $0x10] sm:$0xf]
      %v238 = vld [vmem:[%s223 + $0x14] sm:$0xf]
      %v239 = vld [vmem:[%s223 + $0x18] sm:$0xf]
      %v240 = vld [vmem:[%s223 + $0x1c] sm:$0xf]
      %v241 = vld [vmem:[%s223 + $0x20] sm:$0xf]
      %v242 = vld [vmem:[%s223 + $0x24] sm:$0xf]
      %v243 = vld [vmem:[%s223 + $0x28] sm:$0xf]
      %v244 = vld [vmem:[%s223 + $0x2c] sm:$0xf]
      %v245 = vld [vmem:[%s223 + $0x30] sm:$0xf]
      %v246 = vld [vmem:[%s223 + $0x34] sm:$0xf]
      %v247 = vld [vmem:[%s223 + $0x38] sm:$0xf]
      %v248 = vld [vmem:[%s223 + $0x3c] sm:$0xf]
      %vm249 = vcmask 60416
      %v252 = vsel %vm249, %v233, 4286644096
      %v255 = vsel %vm249, %v234, 4286644096
      %v257 = vmax.bf16 %v252, %v255
      %v259 = vsel %vm249, %v235, 4286644096
      %v262 = vsel %vm249, %v236, 4286644096
      %v264 = vmax.bf16 %v259, %v262
      %v266 = vsel %vm249, %v237, 4286644096
      %v269 = vsel %vm249, %v238, 4286644096
      %v271 = vmax.bf16 %v266, %v269
      %v273 = vsel %vm249, %v239, 4286644096
      %v276 = vsel %vm249, %v240, 4286644096
      %v278 = vmax.bf16 %v273, %v276
      %v280 = vsel %vm249, %v241, 4286644096
      %v283 = vsel %vm249, %v242, 4286644096
      %v285 = vmax.bf16 %v280, %v283
      %v287 = vsel %vm249, %v243, 4286644096
      %v290 = vsel %vm249, %v244, 4286644096
      %v292 = vmax.bf16 %v287, %v290
      %v294 = vsel %vm249, %v245, 4286644096
      %v297 = vsel %vm249, %v246, 4286644096
      %v299 = vmax.bf16 %v294, %v297
      %v301 = vsel %vm249, %v247, 4286644096
      %v304 = vsel %vm249, %v248, 4286644096
      %v306 = vmax.bf16 %v301, %v304
      %315 = vrot.lane.b32.xlu0 %v257, 124
      %v316 = vpop.permute.xlu0 %315
      %317 = vrot.lane.b32.xlu0 %v264, 124
      %v318 = vpop.permute.xlu0 %317
      %319 = vrot.lane.b32.xlu0 %v271, 124
      %v320 = vpop.permute.xlu0 %319
      %321 = vrot.lane.b32.xlu0 %v278, 124
      %v322 = vpop.permute.xlu0 %321
      %323 = vrot.lane.b32.xlu0 %v285, 124
      %v324 = vpop.permute.xlu0 %323
      %325 = vrot.lane.b32.xlu0 %v292, 124
      %v326 = vpop.permute.xlu0 %325
      %327 = vrot.lane.b32.xlu0 %v299, 124
      %v328 = vpop.permute.xlu0 %327
      %329 = vrot.lane.b32.xlu0 %v306, 124
      %v330 = vpop.permute.xlu0 %329
      %v339 = vmax.bf16 %v257, %v316
      %v340 = vmax.bf16 %v264, %v318
      %v341 = vmax.bf16 %v271, %v320
      %v342 = vmax.bf16 %v278, %v322
      %v343 = vmax.bf16 %v285, %v324
      %v344 = vmax.bf16 %v292, %v326
      %v345 = vmax.bf16 %v299, %v328
      %v346 = vmax.bf16 %v306, %v330
      %v355 = vunpack.c.l.b16 %v339
      %v356 = vunpack.c.l.b16 %v340
      %v357 = vunpack.c.l.b16 %v341
      %v358 = vunpack.c.l.b16 %v342
      %v359 = vunpack.c.l.b16 %v343
      %v360 = vunpack.c.l.b16 %v344
      %v361 = vunpack.c.l.b16 %v345
      %v362 = vunpack.c.l.b16 %v346
      %v363 = vpack.c.b16 %v355, %v355
      %v364 = vpack.c.b16 %v356, %v356
      %v365 = vpack.c.b16 %v357, %v357
      %v366 = vpack.c.b16 %v358, %v358
      %v367 = vpack.c.b16 %v359, %v359
      %v368 = vpack.c.b16 %v360, %v360
      %v369 = vpack.c.b16 %v361, %v361
      %v370 = vpack.c.b16 %v362, %v362
      %v372 = vshrl.u32 %v363, 16
      %v374 = vrot.slane %v372, 7
      %v375 = vshll.u32 %v363, 16
      %v377 = vor.u32 %v374, %v375
      %v379 = vshrl.u32 %v364, 16
      %v381 = vrot.slane %v379, 7
      %v382 = vshll.u32 %v364, 16
      %v384 = vor.u32 %v381, %v382
      %v386 = vshrl.u32 %v365, 16
      %v388 = vrot.slane %v386, 7
      %v389 = vshll.u32 %v365, 16
      %v391 = vor.u32 %v388, %v389
      %v393 = vshrl.u32 %v366, 16
      %v395 = vrot.slane %v393, 7
      %v396 = vshll.u32 %v366, 16
      %v398 = vor.u32 %v395, %v396
      %v400 = vshrl.u32 %v367, 16
      %v402 = vrot.slane %v400, 7
      %v403 = vshll.u32 %v367, 16
      %v405 = vor.u32 %v402, %v403
      %v407 = vshrl.u32 %v368, 16
      %v409 = vrot.slane %v407, 7
      %v410 = vshll.u32 %v368, 16
      %v412 = vor.u32 %v409, %v410
      %v414 = vshrl.u32 %v369, 16
      %v416 = vrot.slane %v414, 7
      %v417 = vshll.u32 %v369, 16
      %v419 = vor.u32 %v416, %v417
      %v421 = vshrl.u32 %v370, 16
      %v423 = vrot.slane %v421, 7
      %v424 = vshll.u32 %v370, 16
      %v426 = vor.u32 %v423, %v424
      %vm435 = vcmask 1040384
      %vm436 = vsmask.f32 256
      %vm437 = vmand %vm435, %vm436
      %v438 = vsel %vm437, 0, %v377
      %v439 = vsel %vm437, 0, %v384
      %v440 = vsel %vm437, 0, %v391
      %v441 = vsel %vm437, 0, %v398
      %v442 = vsel %vm437, 0, %v405
      %v443 = vsel %vm437, 0, %v412
      %v444 = vsel %vm437, 0, %v419
      %v445 = vsel %vm437, 0, %v426
      %v446 = vrot.slane %v375, 1
      %v447 = vor.u32 %v372, %v446
      %v448 = vrot.slane %v382, 1
      %v449 = vor.u32 %v379, %v448
      %v450 = vrot.slane %v389, 1
      %v451 = vor.u32 %v386, %v450
      %v452 = vrot.slane %v396, 1
      %v453 = vor.u32 %v393, %v452
      %v454 = vrot.slane %v403, 1
      %v455 = vor.u32 %v400, %v454
      %v456 = vrot.slane %v410, 1
      %v457 = vor.u32 %v407, %v456
      %v458 = vrot.slane %v417, 1
      %v459 = vor.u32 %v414, %v458
      %v460 = vrot.slane %v424, 1
      %v461 = vor.u32 %v421, %v460
      %vm470 = vcmask 1043456
      %vm471 = vsmask.f32 3328
      %vm472 = vmand %vm470, %vm471
      %v473 = vsel %vm472, %v447, 0
      %v474 = vsel %vm472, %v449, 0
      %v475 = vsel %vm472, %v451, 0
      %v476 = vsel %vm472, %v453, 0
      %v477 = vsel %vm472, %v455, 0
      %v478 = vsel %vm472, %v457, 0
      %v479 = vsel %vm472, %v459, 0
      %v480 = vsel %vm472, %v461, 0
      %482 = vrot.lane.b32.xlu0 0, 4
      %v483 = vpop.permute.xlu0 %482
      %484 = vrot.lane.b32.xlu0 %v339, 4
      %v485 = vpop.permute.xlu0 %484
      %486 = vrot.lane.b32.xlu0 %v340, 4
      %v487 = vpop.permute.xlu0 %486
      %488 = vrot.lane.b32.xlu0 %v341, 4
      %v489 = vpop.permute.xlu0 %488
      %490 = vrot.lane.b32.xlu0 %v342, 4
      %v491 = vpop.permute.xlu0 %490
      %492 = vrot.lane.b32.xlu0 %v343, 4
      %v493 = vpop.permute.xlu0 %492
      %494 = vrot.lane.b32.xlu0 %v344, 4
      %v495 = vpop.permute.xlu0 %494
      %496 = vrot.lane.b32.xlu0 %v345, 4
      %v497 = vpop.permute.xlu0 %496
      %505 = vrot.lane.b32.xlu0 0, 8
      %v506 = vpop.permute.xlu0 %505
      %507 = vrot.lane.b32.xlu0 %v473, 8
      %v508 = vpop.permute.xlu0 %507
      %509 = vrot.lane.b32.xlu0 %v474, 8
      %v510 = vpop.permute.xlu0 %509
      %511 = vrot.lane.b32.xlu0 %v475, 8
      %v512 = vpop.permute.xlu0 %511
      %513 = vrot.lane.b32.xlu0 %v476, 8
      %v514 = vpop.permute.xlu0 %513
      %515 = vrot.lane.b32.xlu0 %v477, 8
      %v516 = vpop.permute.xlu0 %515
      %517 = vrot.lane.b32.xlu0 %v478, 8
      %v518 = vpop.permute.xlu0 %517
      %519 = vrot.lane.b32.xlu0 %v479, 8
      %v520 = vpop.permute.xlu0 %519
      %529 = vrot.lane.b32.xlu0 %v438, 12
      %v530 = vpop.permute.xlu0 %529
      %531 = vrot.lane.b32.xlu0 %v439, 12
      %v532 = vpop.permute.xlu0 %531
      %533 = vrot.lane.b32.xlu0 %v440, 12
      %v534 = vpop.permute.xlu0 %533
      %535 = vrot.lane.b32.xlu0 %v441, 12
      %v536 = vpop.permute.xlu0 %535
      %537 = vrot.lane.b32.xlu0 %v442, 12
      %v538 = vpop.permute.xlu0 %537
      %539 = vrot.lane.b32.xlu0 %v443, 12
      %v540 = vpop.permute.xlu0 %539
      %541 = vrot.lane.b32.xlu0 %v444, 12
      %v542 = vpop.permute.xlu0 %541
      %543 = vrot.lane.b32.xlu0 %v445, 12
      %v544 = vpop.permute.xlu0 %543
      %545 = vrot.lane.b32.xlu0 %v363, 16
      %v546 = vpop.permute.xlu0 %545
      %547 = vrot.lane.b32.xlu0 %v364, 16
      %v548 = vpop.permute.xlu0 %547
      %549 = vrot.lane.b32.xlu0 %v365, 16
      %v550 = vpop.permute.xlu0 %549
      %551 = vrot.lane.b32.xlu0 %v366, 16
      %v552 = vpop.permute.xlu0 %551
      %553 = vrot.lane.b32.xlu0 %v367, 16
      %v554 = vpop.permute.xlu0 %553
      %555 = vrot.lane.b32.xlu0 %v368, 16
      %v556 = vpop.permute.xlu0 %555
      %557 = vrot.lane.b32.xlu0 %v369, 16
      %v558 = vpop.permute.xlu0 %557
      %559 = vrot.lane.b32.xlu0 %v370, 16
      %v560 = vpop.permute.xlu0 %559
      %562 = vrot.lane.b32.xlu0 %v473, 20
      %v563 = vpop.permute.xlu0 %562
      %564 = vrot.lane.b32.xlu0 %v474, 20
      %v565 = vpop.permute.xlu0 %564
      %566 = vrot.lane.b32.xlu0 %v475, 20
      %v567 = vpop.permute.xlu0 %566
      %568 = vrot.lane.b32.xlu0 %v476, 20
      %v569 = vpop.permute.xlu0 %568
      %570 = vrot.lane.b32.xlu0 %v477, 20
      %v571 = vpop.permute.xlu0 %570
      %572 = vrot.lane.b32.xlu0 %v478, 20
      %v573 = vpop.permute.xlu0 %572
      %574 = vrot.lane.b32.xlu0 %v479, 20
      %v575 = vpop.permute.xlu0 %574
      %576 = vrot.lane.b32.xlu0 %v480, 20
      %v577 = vpop.permute.xlu0 %576
      %578 = vrot.lane.b32.xlu0 %v439, 24
      %v579 = vpop.permute.xlu0 %578
      %580 = vrot.lane.b32.xlu0 %v440, 24
      %v581 = vpop.permute.xlu0 %580
      %582 = vrot.lane.b32.xlu0 %v441, 24
      %v583 = vpop.permute.xlu0 %582
      %584 = vrot.lane.b32.xlu0 %v442, 24
      %v585 = vpop.permute.xlu0 %584
      %586 = vrot.lane.b32.xlu0 %v443, 24
      %v587 = vpop.permute.xlu0 %586
      %588 = vrot.lane.b32.xlu0 %v444, 24
      %v589 = vpop.permute.xlu0 %588
      %590 = vrot.lane.b32.xlu0 %v445, 24
      %v591 = vpop.permute.xlu0 %590
      %592 = vrot.lane.b32.xlu0 0, 24
      %v593 = vpop.permute.xlu0 %592
      %v594 = vunpack.c.l.b16 0
      %v595 = vpack.c.b16 %v594, %v594
      %596 = vrot.lane.b32.xlu0 %v364, 28
      %v597 = vpop.permute.xlu0 %596
      %598 = vrot.lane.b32.xlu0 %v365, 28
      %v599 = vpop.permute.xlu0 %598
      %600 = vrot.lane.b32.xlu0 %v366, 28
      %v601 = vpop.permute.xlu0 %600
      %602 = vrot.lane.b32.xlu0 %v367, 28
      %v603 = vpop.permute.xlu0 %602
      %604 = vrot.lane.b32.xlu0 %v368, 28
      %v605 = vpop.permute.xlu0 %604
      %606 = vrot.lane.b32.xlu0 %v369, 28
      %v607 = vpop.permute.xlu0 %606
      %608 = vrot.lane.b32.xlu0 %v370, 28
      %v609 = vpop.permute.xlu0 %608
      %610 = vrot.lane.b32.xlu0 %v595, 28
      %v611 = vpop.permute.xlu0 %610
      %612 = vrot.lane.b32.xlu0 %v474, 32
      %v613 = vpop.permute.xlu0 %612
      %614 = vrot.lane.b32.xlu0 %v475, 32
      %v615 = vpop.permute.xlu0 %614
      %616 = vrot.lane.b32.xlu0 %v476, 32
      %v617 = vpop.permute.xlu0 %616
      %618 = vrot.lane.b32.xlu0 %v477, 32
      %v619 = vpop.permute.xlu0 %618
      %620 = vrot.lane.b32.xlu0 %v478, 32
      %v621 = vpop.permute.xlu0 %620
      %622 = vrot.lane.b32.xlu0 %v479, 32
      %v623 = vpop.permute.xlu0 %622
      %624 = vrot.lane.b32.xlu0 %v480, 32
      %v625 = vpop.permute.xlu0 %624
      %626 = vrot.lane.b32.xlu0 0, 32
      %v627 = vpop.permute.xlu0 %626
      %vm628 = vcmask 31744
      %v631 = vsel %vm628, 0, %v483
      %v634 = vsel %vm628, %v438, %v485
      %v637 = vsel %vm628, %v439, %v487
      %v640 = vsel %vm628, %v440, %v489
      %v643 = vsel %vm628, %v441, %v491
      %v646 = vsel %vm628, %v442, %v493
      %v649 = vsel %vm628, %v443, %v495
      %v652 = vsel %vm628, %v444, %v497
      %vm653 = vcmask 64512
      %v655 = vsel %vm653, %v631, %v506
      %v657 = vsel %vm653, %v634, %v508
      %v659 = vsel %vm653, %v637, %v510
      %v661 = vsel %vm653, %v640, %v512
      %v663 = vsel %vm653, %v643, %v514
      %v665 = vsel %vm653, %v646, %v516
      %v667 = vsel %vm653, %v649, %v518
      %v669 = vsel %vm653, %v652, %v520
      %vm670 = vcmask 97280
      %v672 = vsel %vm670, %v655, %v530
      %v674 = vsel %vm670, %v657, %v532
      %v676 = vsel %vm670, %v659, %v534
      %v678 = vsel %vm670, %v661, %v536
      %v680 = vsel %vm670, %v663, %v538
      %v682 = vsel %vm670, %v665, %v540
      %v684 = vsel %vm670, %v667, %v542
      %v686 = vsel %vm670, %v669, %v544
      %vm687 = vcmask 130048
      %v689 = vsel %vm687, %v672, %v546
      %v691 = vsel %vm687, %v674, %v548
      %v693 = vsel %vm687, %v676, %v550
      %v695 = vsel %vm687, %v678, %v552
      %v697 = vsel %vm687, %v680, %v554
      %v699 = vsel %vm687, %v682, %v556
      %v701 = vsel %vm687, %v684, %v558
      %v703 = vsel %vm687, %v686, %v560
      %vm704 = vcmask 162816
      %v706 = vsel %vm704, %v689, %v563
      %v708 = vsel %vm704, %v691, %v565
      %v710 = vsel %vm704, %v693, %v567
      %v712 = vsel %vm704, %v695, %v569
      %v714 = vsel %vm704, %v697, %v571
      %v716 = vsel %vm704, %v699, %v573
      %v718 = vsel %vm704, %v701, %v575
      %v720 = vsel %vm704, %v703, %v577
      %vm721 = vcmask 195584
      %v723 = vsel %vm721, %v706, %v579
      %v725 = vsel %vm721, %v708, %v581
      %v727 = vsel %vm721, %v710, %v583
      %v729 = vsel %vm721, %v712, %v585
      %v731 = vsel %vm721, %v714, %v587
      %v733 = vsel %vm721, %v716, %v589
      %v735 = vsel %vm721, %v718, %v591
      %v737 = vsel %vm721, %v720, %v593
      %vm738 = vcmask 228352
      %v740 = vsel %vm738, %v723, %v597
      %v742 = vsel %vm738, %v725, %v599
      %v744 = vsel %vm738, %v727, %v601
      %v746 = vsel %vm738, %v729, %v603
      %v748 = vsel %vm738, %v731, %v605
      %v750 = vsel %vm738, %v733, %v607
      %v752 = vsel %vm738, %v735, %v609
      %v754 = vsel %vm738, %v737, %v611
      %vm755 = vcmask 261120
      %v757 = vsel %vm755, %v740, %v613
      %v759 = vsel %vm755, %v742, %v615
      %v761 = vsel %vm755, %v744, %v617
      %v763 = vsel %vm755, %v746, %v619
      %v765 = vsel %vm755, %v748, %v621
      %v767 = vsel %vm755, %v750, %v623
      %v769 = vsel %vm755, %v752, %v625
      %v771 = vsel %vm755, %v754, %v627
      %v772 = vld [vmem:[%s1] sm:$0xf]
      %v773 = vld [vmem:[%s1 + $0x4] sm:$0xf]
      %v774 = vld [vmem:[%s1 + $0x8] sm:$0xf]
      %v775 = vld [vmem:[%s1 + $0xc] sm:$0xf]
      %v776 = vld [vmem:[%s1 + $0x10] sm:$0x3]
      %v777 = vld [vmem:[%s2] sm:$0x1]
      %v779 = vlaneseq
      %v780 = vshrl.u32 %v779, 7
      %v781 = vsub.s32 0, %v780
      %v782 = vrot.slane %v777, %v781
      %v792 = vunpack.c.l.b16 %v757
      %v793 = vunpack.c.l.b16 %v759
      %v794 = vunpack.c.l.b16 %v761
      %v795 = vunpack.c.l.b16 %v763
      %v796 = vunpack.c.l.b16 %v765
      %v797 = vunpack.c.l.b16 %v767
      %v798 = vunpack.c.l.b16 %v769
      %v799 = vunpack.c.l.b16 %v771
      %v800 = vpack.c.b16 %v793, %v792
      %v801 = vpack.c.b16 %v795, %v794
      %v802 = vpack.c.b16 %v797, %v796
      %v803 = vpack.c.b16 %v799, %v798
      %v809 = vunpack.c.l.b16 %v772
      %v810 = vunpack.c.l.b16 %v773
      %v811 = vunpack.c.l.b16 %v774
      %v812 = vunpack.c.l.b16 %v775
      %v813 = vunpack.c.l.b16 %v776
      %v814 = vpack.c.b16 %v810, %v809
      %v815 = vpack.c.b16 %v812, %v811
      %v816 = vpack.c.b16 %v813, %v813
      %vm819 = vcmask 293888
      %v821 = vsel %vm819, %v800, 0
      %v824 = vsel %vm819, %v801, 0
      %v827 = vsel %vm819, %v802, 0
      %v830 = vsel %vm819, %v803, 0
      %vm832 = vcmask 1041408
      %v834 = vsel %vm832, %v816, 0
      %836 = vmatprep.subr.bf16.mxu0 0
      %837 = vmatpush1.bf16.msra.mxu0 %v814
      %838 = vmatprep.subr.bf16.mxu0 0
      %839 = vmatpush1.bf16.msra.mxu0 %v815
      %840 = vmatprep.subr.bf16.mxu0 0
      %841 = vmatpush1.bf16.msra.mxu0 %v834
      %842 = vmatprep.subr.bf16.mxu0 0
      %843 = vmatpush1.bf16.msra.mxu0 0
      %844 = vmatprep.subr.bf16.mxu0 0
      %845 = vmatpush1.bf16.msra.mxu0 0
      %846 = vmatprep.subr.bf16.mxu0 0
      %847 = vmatpush1.bf16.msra.mxu0 0
      %848 = vmatprep.subr.bf16.mxu0 0
      %849 = vmatpush1.bf16.msra.mxu0 0
      %850 = vmatprep.subr.bf16.mxu0 0
      %851 = vmatpush1.bf16.msra.mxu0 0
      %852 = vmatprep.subr.bf16.mxu0 0
      %853 = vmatpush1.bf16.msra.mxu0 0
      %854 = vmatprep.subr.bf16.mxu0 0
      %855 = vmatpush1.bf16.msra.mxu0 0
      %856 = vmatprep.subr.bf16.mxu0 0
      %857 = vmatpush1.bf16.msra.mxu0 0
      %858 = vmatprep.subr.bf16.mxu0 0
      %859 = vmatpush1.bf16.msra.mxu0 0
      %860 = vmatprep.subr.bf16.mxu0 0
      %861 = vmatpush1.bf16.msra.mxu0 0
      %862 = vmatprep.subr.bf16.mxu0 0
      %863 = vmatpush1.bf16.msra.mxu0 0
      %864 = vmatprep.subr.bf16.mxu0 0
      %865 = vmatpush1.bf16.msra.mxu0 0
      %866 = vmatprep.subr.bf16.mxu0 0
      %867 = vmatpush1.bf16.msra.mxu0 0
      %868 = vmatprep.mubr.bf16.mxu0 0
      %869 = vmatmul.mubr.bf16.gmra.mrb[0].mxu0 %v821
      %v870 = vpop.f32.mrb[0].mxu0
      %v871 = vadd.f32 %v782, %v870
      %v872 = vpop.f32.mrb[0].mxu0
      %v873 = vpop.f32.mrb[0].mxu0
      %v874 = vadd.f32 %v782, %v873
      %v875 = vpop.f32.mrb[0].mxu0
      %876 = vmatprep.mubr.bf16.mxu0 0
      %877 = vmatmul.mubr.bf16.gmra.mrb[0].mxu0 %v824
      %v878 = vpop.f32.mrb[0].mxu0
      %v879 = vadd.f32 %v782, %v878
      %v880 = vpop.f32.mrb[0].mxu0
      %v881 = vpop.f32.mrb[0].mxu0
      %v882 = vadd.f32 %v782, %v881
      %v883 = vpop.f32.mrb[0].mxu0
      %884 = vmatprep.mubr.bf16.mxu0 0
      %885 = vmatmul.mubr.bf16.gmra.mrb[0].mxu0 %v827
      %v886 = vpop.f32.mrb[0].mxu0
      %v887 = vadd.f32 %v782, %v886
      %v888 = vpop.f32.mrb[0].mxu0
      %v889 = vpop.f32.mrb[0].mxu0
      %v890 = vadd.f32 %v782, %v889
      %v891 = vpop.f32.mrb[0].mxu0
      %892 = vmatprep.mubr.bf16.mxu0 0
      %893 = vmatmul.mubr.bf16.gmra.mrb[0].mxu0 %v830
      %v894 = vpop.f32.mrb[0].mxu0
      %v895 = vadd.f32 %v782, %v894
      %v896 = vpop.f32.mrb[0].mxu0
      %v897 = vpop.f32.mrb[0].mxu0
      %v898 = vadd.f32 %v782, %v897
      %v899 = vpop.f32.mrb[0].mxu0
      %900 = vdwg.mxu0
      %v901 = vmax.f32 %v871, 0.0
      %v902 = vmax.f32 %v874, 0.0
      %v903 = vmax.f32 %v879, 0.0
      %v904 = vmax.f32 %v882, 0.0
      %v905 = vmax.f32 %v887, 0.0
      %v906 = vmax.f32 %v890, 0.0
      %v907 = vmax.f32 %v895, 0.0
      %v908 = vmax.f32 %v898, 0.0
      %v909 = vpack.c.bf16 %v902, %v901
      %v910 = vpack.c.bf16 %v904, %v903
      %v911 = vpack.c.bf16 %v906, %v905
      %v912 = vpack.c.bf16 %v908, %v907
      %v917 = vunpack.c.l.b16 %v909
      %v918 = vunpack.c.h.b16 %v909
      %v919 = vunpack.c.l.b16 %v910
      %v920 = vunpack.c.h.b16 %v910
      %v921 = vunpack.c.l.b16 %v911
      %v922 = vunpack.c.h.b16 %v911
      %v923 = vunpack.c.l.b16 %v912
      %v924 = vunpack.c.h.b16 %v912
      %v925 = vpack.c.b16 %v917, %v917
      %v926 = vpack.c.b16 %v918, %v918
      %v927 = vpack.c.b16 %v919, %v919
      %v928 = vpack.c.b16 %v920, %v920
      %v929 = vpack.c.b16 %v921, %v921
      %v930 = vpack.c.b16 %v922, %v922
      %v931 = vpack.c.b16 %v923, %v923
      %v932 = vpack.c.b16 %v924, %v924
      %v934 = vshrl.u32 %v925, 16
      %v936 = vrot.slane %v934, 7
      %v937 = vshll.u32 %v925, 16
      %v939 = vor.u32 %v936, %v937
      %v941 = vshrl.u32 %v926, 16
      %v943 = vrot.slane %v941, 7
      %v944 = vshll.u32 %v926, 16
      %v946 = vor.u32 %v943, %v944
      %v948 = vshrl.u32 %v927, 16
      %v950 = vrot.slane %v948, 7
      %v951 = vshll.u32 %v927, 16
      %v953 = vor.u32 %v950, %v951
      %v955 = vshrl.u32 %v928, 16
      %v957 = vrot.slane %v955, 7
      %v958 = vshll.u32 %v928, 16
      %v960 = vor.u32 %v957, %v958
      %v962 = vshrl.u32 %v929, 16
      %v964 = vrot.slane %v962, 7
      %v965 = vshll.u32 %v929, 16
      %v967 = vor.u32 %v964, %v965
      %v969 = vshrl.u32 %v930, 16
      %v971 = vrot.slane %v969, 7
      %v972 = vshll.u32 %v930, 16
      %v974 = vor.u32 %v971, %v972
      %v976 = vshrl.u32 %v931, 16
      %v978 = vrot.slane %v976, 7
      %v979 = vshll.u32 %v931, 16
      %v981 = vor.u32 %v978, %v979
      %v983 = vshrl.u32 %v932, 16
      %v985 = vrot.slane %v983, 7
      %v986 = vshll.u32 %v932, 16
      %v988 = vor.u32 %v985, %v986
      %v997 = vsel %vm437, 0, %v939
      %v998 = vsel %vm437, 0, %v946
      %v999 = vsel %vm437, 0, %v953
      %v1000 = vsel %vm437, 0, %v960
      %v1001 = vsel %vm437, 0, %v967
      %v1002 = vsel %vm437, 0, %v974
      %v1003 = vsel %vm437, 0, %v981
      %v1004 = vsel %vm437, 0, %v988
      %v1005 = vrot.slane %v937, 1
      %v1006 = vor.u32 %v934, %v1005
      %v1007 = vrot.slane %v944, 1
      %v1008 = vor.u32 %v941, %v1007
      %v1009 = vrot.slane %v951, 1
      %v1010 = vor.u32 %v948, %v1009
      %v1011 = vrot.slane %v958, 1
      %v1012 = vor.u32 %v955, %v1011
      %v1013 = vrot.slane %v965, 1
      %v1014 = vor.u32 %v962, %v1013
      %v1015 = vrot.slane %v972, 1
      %v1016 = vor.u32 %v969, %v1015
      %v1017 = vrot.slane %v979, 1
      %v1018 = vor.u32 %v976, %v1017
      %v1019 = vrot.slane %v986, 1
      %v1020 = vor.u32 %v983, %v1019
      %v1029 = vsel %vm472, %v1006, 0
      %v1030 = vsel %vm472, %v1008, 0
      %v1031 = vsel %vm472, %v1010, 0
      %v1032 = vsel %vm472, %v1012, 0
      %v1033 = vsel %vm472, %v1014, 0
      %v1034 = vsel %vm472, %v1016, 0
      %v1035 = vsel %vm472, %v1018, 0
      %v1036 = vsel %vm472, %v1020, 0
      %1037 = vrot.lane.b32.xlu0 %v925, 8
      %v1038 = vpop.permute.xlu0 %1037
      %1039 = vrot.lane.b32.xlu0 %v926, 8
      %v1040 = vpop.permute.xlu0 %1039
      %1041 = vrot.lane.b32.xlu0 %v927, 8
      %v1042 = vpop.permute.xlu0 %1041
      %1043 = vrot.lane.b32.xlu0 %v928, 8
      %v1044 = vpop.permute.xlu0 %1043
      %1045 = vrot.lane.b32.xlu0 %v929, 8
      %v1046 = vpop.permute.xlu0 %1045
      %1047 = vrot.lane.b32.xlu0 %v930, 8
      %v1048 = vpop.permute.xlu0 %1047
      %1049 = vrot.lane.b32.xlu0 %v931, 8
      %v1050 = vpop.permute.xlu0 %1049
      %1058 = vrot.lane.b32.xlu0 0, 16
      %v1059 = vpop.permute.xlu0 %1058
      %1060 = vrot.lane.b32.xlu0 %v1029, 16
      %v1061 = vpop.permute.xlu0 %1060
      %1062 = vrot.lane.b32.xlu0 %v1030, 16
      %v1063 = vpop.permute.xlu0 %1062
      %1064 = vrot.lane.b32.xlu0 %v1031, 16
      %v1065 = vpop.permute.xlu0 %1064
      %1066 = vrot.lane.b32.xlu0 %v1032, 16
      %v1067 = vpop.permute.xlu0 %1066
      %1068 = vrot.lane.b32.xlu0 %v1033, 16
      %v1069 = vpop.permute.xlu0 %1068
      %1070 = vrot.lane.b32.xlu0 %v1034, 16
      %v1071 = vpop.permute.xlu0 %1070
      %1072 = vrot.lane.b32.xlu0 %v1035, 16
      %v1073 = vpop.permute.xlu0 %1072
      %1082 = vrot.lane.b32.xlu0 %v997, 24
      %v1083 = vpop.permute.xlu0 %1082
      %1084 = vrot.lane.b32.xlu0 %v998, 24
      %v1085 = vpop.permute.xlu0 %1084
      %1086 = vrot.lane.b32.xlu0 %v999, 24
      %v1087 = vpop.permute.xlu0 %1086
      %1088 = vrot.lane.b32.xlu0 %v1000, 24
      %v1089 = vpop.permute.xlu0 %1088
      %1090 = vrot.lane.b32.xlu0 %v1001, 24
      %v1091 = vpop.permute.xlu0 %1090
      %1092 = vrot.lane.b32.xlu0 %v1002, 24
      %v1093 = vpop.permute.xlu0 %1092
      %1094 = vrot.lane.b32.xlu0 %v1003, 24
      %v1095 = vpop.permute.xlu0 %1094
      %1096 = vrot.lane.b32.xlu0 %v1004, 24
      %v1097 = vpop.permute.xlu0 %1096
      %1098 = vrot.lane.b32.xlu0 %v925, 32
      %v1099 = vpop.permute.xlu0 %1098
      %1100 = vrot.lane.b32.xlu0 %v926, 32
      %v1101 = vpop.permute.xlu0 %1100
      %1102 = vrot.lane.b32.xlu0 %v927, 32
      %v1103 = vpop.permute.xlu0 %1102
      %1104 = vrot.lane.b32.xlu0 %v928, 32
      %v1105 = vpop.permute.xlu0 %1104
      %1106 = vrot.lane.b32.xlu0 %v929, 32
      %v1107 = vpop.permute.xlu0 %1106
      %1108 = vrot.lane.b32.xlu0 %v930, 32
      %v1109 = vpop.permute.xlu0 %1108
      %1110 = vrot.lane.b32.xlu0 %v931, 32
      %v1111 = vpop.permute.xlu0 %1110
      %1112 = vrot.lane.b32.xlu0 %v932, 32
      %v1113 = vpop.permute.xlu0 %1112
      %1115 = vrot.lane.b32.xlu0 %v1029, 40
      %v1116 = vpop.permute.xlu0 %1115
      %1117 = vrot.lane.b32.xlu0 %v1030, 40
      %v1118 = vpop.permute.xlu0 %1117
      %1119 = vrot.lane.b32.xlu0 %v1031, 40
      %v1120 = vpop.permute.xlu0 %1119
      %1121 = vrot.lane.b32.xlu0 %v1032, 40
      %v1122 = vpop.permute.xlu0 %1121
      %1123 = vrot.lane.b32.xlu0 %v1033, 40
      %v1124 = vpop.permute.xlu0 %1123
      %1125 = vrot.lane.b32.xlu0 %v1034, 40
      %v1126 = vpop.permute.xlu0 %1125
      %1127 = vrot.lane.b32.xlu0 %v1035, 40
      %v1128 = vpop.permute.xlu0 %1127
      %1129 = vrot.lane.b32.xlu0 %v1036, 40
      %v1130 = vpop.permute.xlu0 %1129
      %1131 = vrot.lane.b32.xlu0 %v998, 48
      %v1132 = vpop.permute.xlu0 %1131
      %1133 = vrot.lane.b32.xlu0 %v999, 48
      %v1134 = vpop.permute.xlu0 %1133
      %1135 = vrot.lane.b32.xlu0 %v1000, 48
      %v1136 = vpop.permute.xlu0 %1135
      %1137 = vrot.lane.b32.xlu0 %v1001, 48
      %v1138 = vpop.permute.xlu0 %1137
      %1139 = vrot.lane.b32.xlu0 %v1002, 48
      %v1140 = vpop.permute.xlu0 %1139
      %1141 = vrot.lane.b32.xlu0 %v1003, 48
      %v1142 = vpop.permute.xlu0 %1141
      %1143 = vrot.lane.b32.xlu0 %v1004, 48
      %v1144 = vpop.permute.xlu0 %1143
      %1145 = vrot.lane.b32.xlu0 0, 48
      %v1146 = vpop.permute.xlu0 %1145
      %1147 = vrot.lane.b32.xlu0 %v926, 56
      %v1148 = vpop.permute.xlu0 %1147
      %1149 = vrot.lane.b32.xlu0 %v927, 56
      %v1150 = vpop.permute.xlu0 %1149
      %1151 = vrot.lane.b32.xlu0 %v928, 56
      %v1152 = vpop.permute.xlu0 %1151
      %1153 = vrot.lane.b32.xlu0 %v929, 56
      %v1154 = vpop.permute.xlu0 %1153
      %1155 = vrot.lane.b32.xlu0 %v930, 56
      %v1156 = vpop.permute.xlu0 %1155
      %1157 = vrot.lane.b32.xlu0 %v931, 56
      %v1158 = vpop.permute.xlu0 %1157
      %1159 = vrot.lane.b32.xlu0 %v932, 56
      %v1160 = vpop.permute.xlu0 %1159
      %1161 = vrot.lane.b32.xlu0 %v595, 56
      %v1162 = vpop.permute.xlu0 %1161
      %1163 = vrot.lane.b32.xlu0 %v1030, 64
      %v1164 = vpop.permute.xlu0 %1163
      %1165 = vrot.lane.b32.xlu0 %v1031, 64
      %v1166 = vpop.permute.xlu0 %1165
      %1167 = vrot.lane.b32.xlu0 %v1032, 64
      %v1168 = vpop.permute.xlu0 %1167
      %1169 = vrot.lane.b32.xlu0 %v1033, 64
      %v1170 = vpop.permute.xlu0 %1169
      %1171 = vrot.lane.b32.xlu0 %v1034, 64
      %v1172 = vpop.permute.xlu0 %1171
      %1173 = vrot.lane.b32.xlu0 %v1035, 64
      %v1174 = vpop.permute.xlu0 %1173
      %1175 = vrot.lane.b32.xlu0 %v1036, 64
      %v1176 = vpop.permute.xlu0 %1175
      %1177 = vrot.lane.b32.xlu0 0, 64
      %v1178 = vpop.permute.xlu0 %1177
      %v1179 = vsel %vm653, 0, %v506
      %v1182 = vsel %vm653, %v997, %v1038
      %v1185 = vsel %vm653, %v998, %v1040
      %v1188 = vsel %vm653, %v999, %v1042
      %v1191 = vsel %vm653, %v1000, %v1044
      %v1194 = vsel %vm653, %v1001, %v1046
      %v1197 = vsel %vm653, %v1002, %v1048
      %v1200 = vsel %vm653, %v1003, %v1050
      %v1202 = vsel %vm687, %v1179, %v1059
      %v1204 = vsel %vm687, %v1182, %v1061
      %v1206 = vsel %vm687, %v1185, %v1063
      %v1208 = vsel %vm687, %v1188, %v1065
      %v1210 = vsel %vm687, %v1191, %v1067
      %v1212 = vsel %vm687, %v1194, %v1069
      %v1214 = vsel %vm687, %v1197, %v1071
      %v1216 = vsel %vm687, %v1200, %v1073
      %v1218 = vsel %vm721, %v1202, %v1083
      %v1220 = vsel %vm721, %v1204, %v1085
      %v1222 = vsel %vm721, %v1206, %v1087
      %v1224 = vsel %vm721, %v1208, %v1089
      %v1226 = vsel %vm721, %v1210, %v1091
      %v1228 = vsel %vm721, %v1212, %v1093
      %v1230 = vsel %vm721, %v1214, %v1095
      %v1232 = vsel %vm721, %v1216, %v1097
      %v1234 = vsel %vm755, %v1218, %v1099
      %v1236 = vsel %vm755, %v1220, %v1101
      %v1238 = vsel %vm755, %v1222, %v1103
      %v1240 = vsel %vm755, %v1224, %v1105
      %v1242 = vsel %vm755, %v1226, %v1107
      %v1244 = vsel %vm755, %v1228, %v1109
      %v1246 = vsel %vm755, %v1230, %v1111
      %v1248 = vsel %vm755, %v1232, %v1113
      %vm1249 = vcmask 326656
      %v1251 = vsel %vm1249, %v1234, %v1116
      %v1253 = vsel %vm1249, %v1236, %v1118
      %v1255 = vsel %vm1249, %v1238, %v1120
      %v1257 = vsel %vm1249, %v1240, %v1122
      %v1259 = vsel %vm1249, %v1242, %v1124
      %v1261 = vsel %vm1249, %v1244, %v1126
      %v1263 = vsel %vm1249, %v1246, %v1128
      %v1265 = vsel %vm1249, %v1248, %v1130
      %vm1266 = vcmask 392192
      %v1268 = vsel %vm1266, %v1251, %v1132
      %v1270 = vsel %vm1266, %v1253, %v1134
      %v1272 = vsel %vm1266, %v1255, %v1136
      %v1274 = vsel %vm1266, %v1257, %v1138
      %v1276 = vsel %vm1266, %v1259, %v1140
      %v1278 = vsel %vm1266, %v1261, %v1142
      %v1280 = vsel %vm1266, %v1263, %v1144
      %v1282 = vsel %vm1266, %v1265, %v1146
      %vm1283 = vcmask 457728
      %v1285 = vsel %vm1283, %v1268, %v1148
      %v1287 = vsel %vm1283, %v1270, %v1150
      %v1289 = vsel %vm1283, %v1272, %v1152
      %v1291 = vsel %vm1283, %v1274, %v1154
      %v1293 = vsel %vm1283, %v1276, %v1156
      %v1295 = vsel %vm1283, %v1278, %v1158
      %v1297 = vsel %vm1283, %v1280, %v1160
      %v1299 = vsel %vm1283, %v1282, %v1162
      %vm1300 = vcmask 523264
      %v1302 = vsel %vm1300, %v1285, %v1164
      %v1304 = vsel %vm1300, %v1287, %v1166
      %v1306 = vsel %vm1300, %v1289, %v1168
      %v1308 = vsel %vm1300, %v1291, %v1170
      %v1310 = vsel %vm1300, %v1293, %v1172
      %v1312 = vsel %vm1300, %v1295, %v1174
      %v1314 = vsel %vm1300, %v1297, %v1176
      %v1316 = vsel %vm1300, %v1299, %v1178
      %v1317 = vld [vmem:[%s3] sm:$0xf]
      %v1318 = vld [vmem:[%s3 + $0x4] sm:$0xf]
      %v1319 = vld [vmem:[%s3 + $0x8] sm:$0xf]
      %v1320 = vld [vmem:[%s3 + $0xc] sm:$0xf]
      %v1321 = vld [vmem:[%s3 + $0x10] sm:$0xf]
      %v1322 = vld [vmem:[%s3 + $0x14] sm:$0xf]
      %v1323 = vld [vmem:[%s3 + $0x18] sm:$0xf]
      %v1324 = vld [vmem:[%s3 + $0x1c] sm:$0xf]
      %v1325 = vld [vmem:[%s3 + $0x20] sm:$0xf]
      %v1326 = vld [vmem:[%s4] sm:$0x1]
      %v1328 = vlaneseq
      %v1329 = vshrl.u32 %v1328, 7
      %v1330 = vsub.s32 0, %v1329
      %v1331 = vrot.slane %v1326, %v1330
      %v1341 = vunpack.c.l.b16 %v1302
      %v1342 = vunpack.c.l.b16 %v1304
      %v1343 = vunpack.c.l.b16 %v1306
      %v1344 = vunpack.c.l.b16 %v1308
      %v1345 = vunpack.c.l.b16 %v1310
      %v1346 = vunpack.c.l.b16 %v1312
      %v1347 = vunpack.c.l.b16 %v1314
      %v1348 = vunpack.c.l.b16 %v1316
      %v1349 = vpack.c.b16 %v1342, %v1341
      %v1350 = vpack.c.b16 %v1344, %v1343
      %v1351 = vpack.c.b16 %v1346, %v1345
      %v1352 = vpack.c.b16 %v1348, %v1347
      %v1362 = vunpack.c.l.b16 %v1317
      %v1363 = vunpack.c.l.b16 %v1318
      %v1364 = vunpack.c.l.b16 %v1319
      %v1365 = vunpack.c.l.b16 %v1320
      %v1366 = vunpack.c.l.b16 %v1321
      %v1367 = vunpack.c.l.b16 %v1322
      %v1368 = vunpack.c.l.b16 %v1323
      %v1369 = vunpack.c.l.b16 %v1324
      %v1370 = vunpack.c.l.b16 %v1325
      %v1371 = vpack.c.b16 %v1363, %v1362
      %v1372 = vpack.c.b16 %v1365, %v1364
      %v1373 = vpack.c.b16 %v1367, %v1366
      %v1374 = vpack.c.b16 %v1369, %v1368
      %v1375 = vpack.c.b16 %v1370, %v1370
      %vm1380 = vcmask 588800
      %v1382 = vsel %vm1380, %v1349, 0
      %v1385 = vsel %vm1380, %v1350, 0
      %v1388 = vsel %vm1380, %v1351, 0
      %v1391 = vsel %vm1380, %v1352, 0
      %vm1393 = vcmask 1043456
      %v1395 = vsel %vm1393, %v1375, 0
      %1397 = vmatprep.subr.bf16.mxu0 0
      %1398 = vmatpush1.bf16.msra.mxu0 %v1371
      %1399 = vmatprep.subr.bf16.mxu0 0
      %1400 = vmatpush1.bf16.msra.mxu0 %v1372
      %1401 = vmatprep.subr.bf16.mxu0 0
      %1402 = vmatpush1.bf16.msra.mxu0 %v1373
      %1403 = vmatprep.subr.bf16.mxu0 0
      %1404 = vmatpush1.bf16.msra.mxu0 %v1374
      %1405 = vmatprep.subr.bf16.mxu0 0
      %1406 = vmatpush1.bf16.msra.mxu0 %v1395
      %1407 = vmatprep.subr.bf16.mxu0 0
      %1408 = vmatpush1.bf16.msra.mxu0 0
      %1409 = vmatprep.subr.bf16.mxu0 0
      %1410 = vmatpush1.bf16.msra.mxu0 0
      %1411 = vmatprep.subr.bf16.mxu0 0
      %1412 = vmatpush1.bf16.msra.mxu0 0
      %1413 = vmatprep.subr.bf16.mxu0 0
      %1414 = vmatpush1.bf16.msra.mxu0 0
      %1415 = vmatprep.subr.bf16.mxu0 0
      %1416 = vmatpush1.bf16.msra.mxu0 0
      %1417 = vmatprep.subr.bf16.mxu0 0
      %1418 = vmatpush1.bf16.msra.mxu0 0
      %1419 = vmatprep.subr.bf16.mxu0 0
      %1420 = vmatpush1.bf16.msra.mxu0 0
      %1421 = vmatprep.subr.bf16.mxu0 0
      %1422 = vmatpush1.bf16.msra.mxu0 0
      %1423 = vmatprep.subr.bf16.mxu0 0
      %1424 = vmatpush1.bf16.msra.mxu0 0
      %1425 = vmatprep.subr.bf16.mxu0 0
      %1426 = vmatpush1.bf16.msra.mxu0 0
      %1427 = vmatprep.subr.bf16.mxu0 0
      %1428 = vmatpush1.bf16.msra.mxu0 0
      %1429 = vmatprep.mubr.bf16.mxu0 0
      %1430 = vmatmul.mubr.bf16.gmra.mrb[0].mxu0 %v1382
      %v1431 = vpop.f32.mrb[0].mxu0
      %v1432 = vadd.f32 %v1331, %v1431
      %v1433 = vpop.f32.mrb[0].mxu0
      %v1434 = vpop.f32.mrb[0].mxu0
      %v1435 = vadd.f32 %v1331, %v1434
      %v1436 = vpop.f32.mrb[0].mxu0
      %1437 = vmatprep.mubr.bf16.mxu0 0
      %1438 = vmatmul.mubr.bf16.gmra.mrb[0].mxu0 %v1385
      %v1439 = vpop.f32.mrb[0].mxu0
      %v1440 = vadd.f32 %v1331, %v1439
      %v1441 = vpop.f32.mrb[0].mxu0
      %v1442 = vpop.f32.mrb[0].mxu0
      %v1443 = vadd.f32 %v1331, %v1442
      %v1444 = vpop.f32.mrb[0].mxu0
      %1445 = vmatprep.mubr.bf16.mxu0 0
      %1446 = vmatmul.mubr.bf16.gmra.mrb[0].mxu0 %v1388
      %v1447 = vpop.f32.mrb[0].mxu0
      %v1448 = vadd.f32 %v1331, %v1447
      %v1449 = vpop.f32.mrb[0].mxu0
      %v1450 = vpop.f32.mrb[0].mxu0
      %v1451 = vadd.f32 %v1331, %v1450
      %v1452 = vpop.f32.mrb[0].mxu0
      %1453 = vmatprep.mubr.bf16.mxu0 0
      %1454 = vmatmul.mubr.bf16.gmra.mrb[0].mxu0 %v1391
      %v1455 = vpop.f32.mrb[0].mxu0
      %v1456 = vadd.f32 %v1331, %v1455
      %v1457 = vpop.f32.mrb[0].mxu0
      %v1458 = vpop.f32.mrb[0].mxu0
      %v1459 = vadd.f32 %v1331, %v1458
      %v1460 = vpop.f32.mrb[0].mxu0
      %1461 = vdwg.mxu0
      %v1462 = vmax.f32 %v1432, 0.0
      %v1463 = vmax.f32 %v1435, 0.0
      %v1464 = vmax.f32 %v1440, 0.0
      %v1465 = vmax.f32 %v1443, 0.0
      %v1466 = vmax.f32 %v1448, 0.0
      %v1467 = vmax.f32 %v1451, 0.0
      %v1468 = vmax.f32 %v1456, 0.0
      %v1469 = vmax.f32 %v1459, 0.0
      %1470 = vst.msk [vmem:[%s229] sm:$0xff] %vm653, %v1462
      %1471 = vst.msk [vmem:[%s229 + $0x8] sm:$0xff] %vm653, %v1463
      %1472 = vst.msk [vmem:[%s229 + $0x10] sm:$0xff] %vm653, %v1464
      %1473 = vst.msk [vmem:[%s229 + $0x18] sm:$0xff] %vm653, %v1465
      %1474 = vst.msk [vmem:[%s229 + $0x20] sm:$0xff] %vm653, %v1466
      %1475 = vst.msk [vmem:[%s229 + $0x28] sm:$0xff] %vm653, %v1467
      %1476 = vst.msk [vmem:[%s229 + $0x30] sm:$0xff] %vm653, %v1468
      %1477 = vst.msk [vmem:[%s229 + $0x38] sm:$0xff] %vm653, %v1469
      %s1478 = smul.u32 8, %s16
      %p1479 = scmp.lt.s32.totalorder %s1478, 15
      %s1480 = scalar_select %p1479, %s1478, 15
      %s1481 = smul.addr %s1480, 8
      %s1482 = scalar_lea.vmem %s5, %s1481
      // Predicated region
      $region41: #{tpu_custom_call.1} parent=39 // pred_check
        %p1483 = pneg %p144
      $region42: #{tpu_custom_call.1} parent=39 // pred_check_branch
        %1485 = sbr.rel (%p1483) target = $region44
      $region43: #{tpu_custom_call.1} parent=39 // pred_region
        %s1486 = smul.u32 8, %s16
      $region44: #{tpu_custom_call.1} parent=39 // pred_fallthru
        _
    $region40: #{tpu_custom_call.1} parent=5 // pred_fallthru
      _
    %p1487 = scmp.le.s32.totalorder 2, %s11
    // Predicated region
    $region45: #{tpu_custom_call.1} parent=5 // pred_check
      %p1488 = pneg %p1487
    $region46: #{tpu_custom_call.1} parent=5 // pred_check_branch
      %1490 = sbr.rel (%p1488) target = $region48
    $region47: #{tpu_custom_call.1} parent=5 // pred_region
      %s1491 = ssub.s32 %s11, 2
      // Predicated region
      $region49: #{tpu_custom_call.1} parent=47 // pred_check
        %p1492 = pneg %p150
      $region50: #{tpu_custom_call.1} parent=47 // pred_check_branch
        %1494 = sbr.rel (%p1492) target = $region52
      $region51: #{tpu_custom_call.1} parent=47 // pred_region
        %s1495 = smul.u32 8, %s17
        %p1496 = scmp.lt.s32.totalorder %s1495, 15
        %s1497 = scalar_select %p1496, %s1495, 15
        %s1498 = smul.addr %s1497, 8
        %s1499 = scalar_lea.vmem %s5, %s1498
      $region52: #{tpu_custom_call.1} parent=47 // pred_fallthru
        _
    $region48: #{tpu_custom_call.1} parent=5 // pred_fallthru
      _
  $region6: #{tpu_custom_call.1} parent=0 // loop_footer
    %s15 = sadd.s32 1, %s11
  $region7: #{tpu_custom_call.1} parent=0 // loop_footer_branch
    %10 = sbr.rel target = $region3
  $region8: #{tpu_custom_call.1} parent=0 // loop_exit
    _

</llo_original>
